<compile_context>
chip_gen: v7x
topology: tpu7x:2x2x1
jax: 0.10.0
libtpu: 0.0.40
codegen_flags: <defaults>
</compile_context>

<pallas_src>
import math

import jax
import jax.numpy as jnp
from jax.experimental import pallas as pl
from jax.experimental.pallas import tpu as pltpu

_LANE = 128
_LANE_CAP = 8192


def _dyt_kernel(alpha_ref, x_ref, w_ref, o_ref):
    """One (tile_rows, L) block of y = w * tanh(alpha * x)."""
    cdtype = w_ref.dtype                       # compute dtype chosen by the wrapper
    alpha = alpha_ref[0].astype(cdtype)        # SMEM scalar
    x = x_ref[...].astype(cdtype)
    o_ref[...] = (w_ref[...] * jnp.tanh(alpha * x)).astype(o_ref.dtype)


def _device_kind():
    try:
        return jax.devices()[0].device_kind.lower()
    except Exception:
        return ""


def _choose_lane_width(H, n):
    """Lane width L of the 2-D view.

    Prefer a multiple of both H and 128 (lane-dense unmasked stores; per-row weight
    pattern is `weight` tiled L//H times) but ONLY when L divides the element count
    exactly -- we never pad/copy the activations.  Otherwise fall back to the natural
    last-dim layout L == H (a block last dim equal to the full array dim is always
    legal, at the cost of partially masked lane stores)."""
    if H % _LANE == 0:
        return H
    L = math.lcm(H, _LANE)
    if L > _LANE_CAP or n % L != 0:
        return H
    # Widen very small hidden dims for wider unmasked stores, as long as the
    # no-copy property (n % L == 0) is preserved.
    while L < 512 and 2 * L <= _LANE_CAP and n % (2 * L) == 0:
        L *= 2
    return L


def layer_norm_parameterized(x, alpha, weight, *, target_block_bytes=None,
                             compute_dtype=None):
    """DyT forward: y = weight * tanh(alpha * x), weight broadcast along the last dim."""
    orig_shape = x.shape
    H = orig_shape[-1]
    assert weight.shape == (H,)
    n = x.size
    itemsize = jnp.dtype(x.dtype).itemsize

    kind = _device_kind()
    if target_block_bytes is None:
        # v7x moves bytes ~2.3x faster -> fewer, larger DMAs; 4 MiB already ~roofline
        # on v5e/v6e.
        target_block_bytes = (8 << 20) if "v7" in kind else (4 << 20)
    if compute_dtype is None:
        if x.dtype == jnp.float32 or not ("v6" in kind or "v7" in kind):
            compute_dtype = jnp.float32        # f32 inputs, and v5-class (no bf16 VALU/EUP)
        else:
            compute_dtype = x.dtype            # bf16 stays bf16 on v6e/v7x

    L = _choose_lane_width(H, n)
    rows = n // L                              # exact by construction (no padding)
    x2 = x.reshape(rows, L)                    # contiguous view -> no HBM copy

    # dtype-aware sublane group size
    sublane = {4: 8, 2: 16, 1: 32}.get(itemsize, 8)
    bytes_per_row = L * itemsize
    by_budget = max(1, target_block_bytes // bytes_per_row)
    by_steps = pl.cdiv(rows, 4)                # keep >= ~4 grid steps when possible
    tile_rows = (min(by_budget, by_steps) // sublane) * sublane
    if tile_rows < sublane:
        # tiny inputs: a block equal to the full row extent is always legal
        tile_rows = min(rows, sublane)

    grid = (pl.cdiv(rows, tile_rows),)         # ragged last block handled by Pallas

    alpha_s = jnp.asarray(alpha, jnp.float32).reshape(1)
    w_row = jnp.tile(weight.astype(compute_dtype), L // H).reshape(1, L)

    block_bytes = tile_rows * L * itemsize
    # double-buffered in + out + elementwise temporaries, with headroom; <= 56 MiB so
    # it fits v7x's 64 MiB physical VMEM.
    vmem_limit = int(min(56 << 20, max(32 << 20, 8 * block_bytes)))

    out = pl.pallas_call(
        _dyt_kernel,
        out_shape=jax.ShapeDtypeStruct((rows, L), x.dtype),
        grid=grid,
        in_specs=[
            pl.BlockSpec(memory_space=pltpu.MemorySpace.SMEM),   # alpha scalar
            pl.BlockSpec((tile_rows, L), lambda i: (i, 0)),      # streaming x tile
            pl.BlockSpec((1, L), lambda i: (0, 0)),              # VMEM-resident weight row
        ],
        out_specs=pl.BlockSpec((tile_rows, L), lambda i: (i, 0)),
        compiler_params=pltpu.CompilerParams(
            dimension_semantics=("parallel",),   # megacore sharding of row blocks
            vmem_limit_bytes=vmem_limit,
        ),
    )(alpha_s, x2, w_row)

    return out.reshape(orig_shape)


if __name__ == "__main__":
    # Module config (reset_parameters semantics): normalized_shape = hidden,
    # alpha <- alpha_init_value, weight <- 1.
    batch, seq, hidden = 2, 8, 32
    alpha_init_value = 0.5

    key = jax.random.PRNGKey(0)
    k1, k2, k3 = jax.random.split(key, 3)

    alpha = jnp.full((1,), alpha_init_value, dtype=jnp.float32)

    def ref(xv, av, wv):
        return wv * jnp.tanh(av * xv.astype(jnp.float32))

    ok = True

    # 1) f32 input, lane-dense path (H=32 -> L=512), matches the module's small config.
    weight = jnp.ones((hidden,), dtype=jnp.float32)
    x = jax.random.normal(k1, (batch, seq, hidden), dtype=jnp.float32)
    y = layer_norm_parameterized(x, alpha[0], weight)
    jax.block_until_ready(y)
    ok &= (y.shape == x.shape)
    ok &= bool(jnp.allclose(y, ref(x, alpha[0], weight), atol=1e-5, rtol=1e-5))

    # 2) f32 input, natural-layout fallback + ragged last row block (H=160, rows=21).
    h2 = 160
    w2 = jnp.ones((h2,), dtype=jnp.float32)
    x2 = jax.random.normal(k2, (3, 7, h2), dtype=jnp.float32)
    y2 = layer_norm_parameterized(x2, alpha[0], w2)
    jax.block_until_ready(y2)
    ok &= bool(jnp.allclose(y2, ref(x2, alpha[0], w2), atol=1e-5, rtol=1e-5))

    # 3) bf16 input (bf16 compute path on v6e/v7x, f32 compute elsewhere).
    h3 = 128
    w3 = jnp.ones((h3,), dtype=jnp.float32)
    x3 = jax.random.normal(k3, (2, 8, h3), dtype=jnp.float32).astype(jnp.bfloat16)
    y3 = layer_norm_parameterized(x3, alpha[0], w3)
    jax.block_until_ready(y3)
    ok &= bool(jnp.allclose(y3.astype(jnp.float32), ref(x3, alpha[0], w3),
                            atol=2e-2, rtol=2e-2))

    assert ok
    print("KERNEL_OK")
</pallas_src>

<mosaic_0001>
module attributes {stable_mosaic.version = 11 : i64} {
  func.func @_dyt_kernel(%arg0: i32, %arg1: memref<1xf32, #tpu.memory_space<smem>>, %arg2: memref<1x512xf32, #tpu.memory_space<vmem>>, %arg3: memref<1x512xf32, #tpu.memory_space<vmem>>, %arg4: memref<1x512xf32, #tpu.memory_space<vmem>>) attributes {dimension_semantics = [#tpu.dimension_semantics<parallel>], iteration_bounds = array<i64: 1>, scalar_prefetch = 0 : i64, scratch_operands = 0 : i64, tpu.core_type = #tpu.core_type<tc>, window_params = [{transform_indices = @transform_0, window_bounds = array<i64: 1>}, {transform_indices = @transform_1, window_bounds = array<i64: 1, 512>}, {pipeline_mode = #tpu.pipeline_mode<synchronous>, transform_indices = @transform_2, window_bounds = array<i64: 1, 512>}, {transform_indices = @transform_3, window_bounds = array<i64: 1, 512>}]} {
    %c0 = arith.constant 0 : index
    %0 = memref.load %arg1[%c0] : memref<1xf32, #tpu.memory_space<smem>>
    %c0_0 = arith.constant 0 : index
    %c0_1 = arith.constant 0 : index
    %1 = vector.load %arg2[%c0_0, %c0_1] : memref<1x512xf32, #tpu.memory_space<vmem>>, vector<1x512xf32>
    %c0_2 = arith.constant 0 : index
    %c0_3 = arith.constant 0 : index
    %2 = vector.load %arg3[%c0_2, %c0_3] : memref<1x512xf32, #tpu.memory_space<vmem>>, vector<1x512xf32>
    %3 = vector.broadcast %0 : f32 to vector<1x512xf32>
    %4 = arith.mulf %3, %1 : vector<1x512xf32>
    %5 = math.tanh %4 : vector<1x512xf32>
    %6 = arith.mulf %2, %5 : vector<1x512xf32>
    %c0_4 = arith.constant 0 : index
    %c0_5 = arith.constant 0 : index
    %7 = vector.load %arg4[%c0_4, %c0_5] : memref<1x512xf32, #tpu.memory_space<vmem>>, vector<1x512xf32>
    tpu.vector_store %arg4[%c0_4, %c0_5], %6 {strides = array<i32>} : memref<1x512xf32, #tpu.memory_space<vmem>>, vector<1x512xf32>,
    return
  }
  func.func @transform_0(%arg0: i32) -> i32 {
    %c0_i32 = arith.constant 0 : i32
    %c0_i32_0 = arith.constant 0 : i32
    return %c0_i32 : i32
  }
  func.func @transform_1(%arg0: i32) -> (i32, i32) {
    %c0_i32 = arith.constant 0 : i32
    %c0_i32_0 = arith.constant 0 : i32
    return %arg0, %c0_i32 : i32, i32
  }
  func.func @transform_2(%arg0: i32) -> (i32, i32) {
    %c0_i32 = arith.constant 0 : i32
    %c0_i32_0 = arith.constant 0 : i32
    %c0_i32_1 = arith.constant 0 : i32
    return %c0_i32, %c0_i32_0 : i32, i32
  }
  func.func @transform_3(%arg0: i32) -> (i32, i32) {
    %c0_i32 = arith.constant 0 : i32
    %c0_i32_0 = arith.constant 0 : i32
    return %arg0, %c0_i32 : i32, i32
  }
}

</mosaic_0001>

<llo_original>
// kernel: tpu_custom_call.1
$region0: #{tpu_custom_call.1}
  #allocation0 [shape = 'u32[]', space=smem, size = 0x4, offset = 0x4, fixed_abs, tag = 'smem constant byte address 0x4 - core index']
  #allocation1 [shape = 'u32[144,128]{1,0:T(1,128)}', space=vmem, size = 0x12000, scoped, tag = 'internal scratch']
  #allocation2 [shape = 'f32[1]{0:T(128)S(6)}', space=smem, size = 0x200, scoped, tag = 'scoped memory for tpu_custom_call.1']
  %s0 = inlined_call_operand.<no memory space> [shape: f32[1], index: 0, kind: input, shape index: {}]
  %s1 = inlined_call_operand.hbm [shape: f32[1,512], index: 1, kind: input, shape index: {}]
  %s2 = inlined_call_operand.vmem [shape: f32[1,512], index: 2, kind: input, shape index: {}]
  %s3 = inlined_call_operand.hbm [shape: f32[1,512], index: 3, kind: output, shape index: {}]
  %s4 = sld [smem:[#allocation0]]
  $region26: #{tpu_custom_call.1} parent=0
    _
  %s6 = ssub.s32 1, %s4
  %s7 = scalar_select 0, %s6, %s4
  %8 = sst [smem:[#allocation2]] %s0
  $region1: #{tpu_custom_call.1} parent=0
    #allocation3 [shape = 'u8[2048]{0}', space=vmem, size = 0x800, scoped, tag = 'input window, operand 1, single buffered']
    #allocation4 [shape = 's32[1]{0}', space=sflag, size = 0x4, scoped, tag = 'scoped memory for tpu_custom_call.1']
    #allocation5 [shape = 's32[1]{0}', space=sflag, size = 0x4, scoped, tag = 'scoped memory for tpu_custom_call.1']
    #allocation6 [shape = 'u8[2048]{0}', space=vmem, size = 0x800, scoped, tag = 'output window, operand 0, single buffered']
    %9 = vsyncpa [#allocation4], 0
    %10 = vsyncpa [#allocation5], 0
    // Predicated region
    $region2: #{tpu_custom_call.1} parent=1 // pred_check
      _
    $region3: #{tpu_custom_call.1} parent=1 // pred_check_branch
      %12 = sbr.rel (0) target = $region5
    $region4: #{tpu_custom_call.1} parent=1 // pred_region
      _
    $region5: #{tpu_custom_call.1} parent=1 // pred_fallthru
      _
    // Predicated region
    $region6: #{tpu_custom_call.1} parent=1 // pred_check
      _
    $region7: #{tpu_custom_call.1} parent=1 // pred_check_branch
      %14 = sbr.rel (0) target = $region9
    $region8: #{tpu_custom_call.1} parent=1 // pred_region
      %s16 = ssub.s32 64, 64
      %17 = vsyncadd [#allocation4], %s16
      %s19 = sshll.u32 [#allocation3], 4
      %s20 = int_to_ptr.vmem [resolvable:$true] %s19
      %22 = dma.hbm_to_vmem [thread:$0]  %s1, 64, %s20, [#allocation4]
    $region9: #{tpu_custom_call.1} parent=1 // pred_fallthru
      _
    // Predicated region
    $region10: #{tpu_custom_call.1} parent=1 // pred_check
      _
    $region11: #{tpu_custom_call.1} parent=1 // pred_check_branch
      %24 = sbr.rel (0) target = $region13
    $region12: #{tpu_custom_call.1} parent=1 // pred_region
      _
    $region13: #{tpu_custom_call.1} parent=1 // pred_fallthru
      _
    // Predicated region
    $region14: #{tpu_custom_call.1} parent=1 // pred_check
      _
    $region15: #{tpu_custom_call.1} parent=1 // pred_check_branch
      %26 = sbr.rel (0) target = $region17
    $region16: #{tpu_custom_call.1} parent=1 // pred_region
      %27 = dma.done [#allocation4], 64
    $region17: #{tpu_custom_call.1} parent=1 // pred_fallthru
      _
    %s28 = sld [smem:[#allocation2]]
    %v29 = vld [vmem:[#allocation3] sm:$0xf]
    %v30 = vld [vmem:[%s2] sm:$0xf]
    %v31 = vstv %s28
    %v32 = vmul.f32 %v31, %v29
    %v33 = vtanh.pop %v32
    %v34 = vmul.f32 %v30, %v33
    %v35 = vlaneseq
    %vm36 = vcmp.ge.s32.totalorder %v35, 0
    %vm37 = vcmp.lt.s32.totalorder %v35, 512
    %vm38 = vmand %vm36, %vm37
    %39 = vst.msk [vmem:[#allocation6] sm:$0xf] %vm38, %v34
    // Predicated region
    $region18: #{tpu_custom_call.1} parent=1 // pred_check
      _
    $region19: #{tpu_custom_call.1} parent=1 // pred_check_branch
      %41 = sbr.rel (0) target = $region21
    $region20: #{tpu_custom_call.1} parent=1 // pred_region
      %s43 = ssub.s32 64, 64
      %44 = vsyncadd [#allocation5], %s43
      %s46 = sshll.u32 [#allocation6], 4
      %s47 = int_to_ptr.vmem [resolvable:$true] %s46
      %49 = dma.vmem_to_hbm [thread:$0]  %s47, 64, %s3, [#allocation5]
    $region21: #{tpu_custom_call.1} parent=1 // pred_fallthru
      _
    // Predicated region
    $region22: #{tpu_custom_call.1} parent=1 // pred_check
      _
    $region23: #{tpu_custom_call.1} parent=1 // pred_check_branch
      %51 = sbr.rel (0) target = $region25
    $region24: #{tpu_custom_call.1} parent=1 // pred_region
      %52 = dma.done [#allocation5], 64
    $region25: #{tpu_custom_call.1} parent=1 // pred_fallthru
      _
    %53 = vsyncpa [#allocation4], 1
    %54 = vsyncpa [#allocation5], 1

</llo_original>
